<compile_context>
chip_gen: v6e
topology: v6e:2x2x1
jax: 0.10.0
libtpu: 0.0.40
codegen_flags: <defaults>
</compile_context>

<pallas_src>
import functools

import jax
import jax.numpy as jnp
from jax.experimental import pallas as pl
from jax.experimental.pallas import tpu as pltpu


def _triplet_kernel(a_ref, p_ref, n_ref, out_ref, *, margin, reduction,
                    distance, true_batch, tile_rows, needs_mask):
    a = a_ref[...].astype(jnp.float32)
    p = p_ref[...].astype(jnp.float32)
    n = n_ref[...].astype(jnp.float32)

    if distance == "euclidean":
        # F.pairwise_distance: ||x1 - x2 + eps||_2 with eps=1e-6
        eps = jnp.float32(1e-6)
        dp = a - p + eps
        dn = a - n + eps
        pos_dist = jnp.sqrt(jnp.sum(dp * dp, axis=-1, keepdims=True))
        neg_dist = jnp.sqrt(jnp.sum(dn * dn, axis=-1, keepdims=True))
    elif distance == "cosine":
        # F.cosine_similarity: sum(x1*x2) / max(||x1||*||x2||, eps), eps=1e-8
        # Implemented as dot * rsqrt(max(|x1|^2*|x2|^2, eps^2)) so the divide
        # and the extra sqrt land on the (otherwise idle) EUP.
        eps = jnp.float32(1e-8)
        aa = jnp.sum(a * a, axis=-1, keepdims=True)
        pp = jnp.sum(p * p, axis=-1, keepdims=True)
        nn = jnp.sum(n * n, axis=-1, keepdims=True)
        ap = jnp.sum(a * p, axis=-1, keepdims=True)
        an = jnp.sum(a * n, axis=-1, keepdims=True)
        pos_sim = ap * jax.lax.rsqrt(jnp.maximum(aa * pp, eps * eps))
        neg_sim = an * jax.lax.rsqrt(jnp.maximum(aa * nn, eps * eps))
        pos_dist = 1.0 - pos_sim
        neg_dist = 1.0 - neg_sim
    else:
        raise ValueError(f"Unsupported distance metric: {distance}")

    # hinge: relu(pos - neg + margin), shape (tile_rows, 1)
    losses = jnp.maximum(pos_dist - neg_dist + jnp.float32(margin), 0.0)

    if reduction in ("mean", "sum"):
        if needs_mask:
            # Zero out rows that belong to the zero-padded tail of the batch.
            row = jax.lax.broadcasted_iota(jnp.int32, (tile_rows, 1), 0)
            global_row = pl.program_id(0) * tile_rows + row
            losses = jnp.where(global_row < true_batch, losses, 0.0)

        partial = jnp.sum(losses)

        @pl.when(pl.program_id(0) == 0)
        def _():
            out_ref[...] = jnp.zeros_like(out_ref)

        out_ref[...] = out_ref[...] + partial

        @pl.when(pl.program_id(0) == pl.num_programs(0) - 1)
        def _():
            if reduction == "mean":
                out_ref[...] = out_ref[...] / jnp.float32(true_batch)
    else:  # 'none'
        out_ref[...] = losses


def _choose_tile_rows(batch, dim):
    """Pick a tile row count: multiple of 8, VMEM-safe on all generations."""
    # 3 inputs x 2 pipeline buffers x TB x D x 4 bytes <= ~12 MiB
    # (fits v5e's 16 MiB scoped default; far under v6e 128 MiB / v7x 64 MiB).
    budget_bytes = 12 * 1024 * 1024
    tb = budget_bytes // (3 * 2 * dim * 4)
    tb = max(8, min(tb, 1024))
    tb = (tb // 8) * 8
    batch_pad8 = ((batch + 7) // 8) * 8
    return min(tb, batch_pad8)


def triplet_loss(anchors, positives, negatives, *, margin=0.3,
                 reduction="mean", distance="euclidean", tile_rows=None):
    """Pallas TripletLoss forward. anchors/positives/negatives: [B, D]."""
    if reduction not in ("mean", "sum", "none"):
        raise ValueError(f"Unsupported reduction: {reduction}")
    if distance not in ("euclidean", "cosine"):
        raise ValueError(f"Unsupported distance metric: {distance}")

    B, D = anchors.shape

    if tile_rows is None:
        tb = _choose_tile_rows(B, D)
    else:
        tb = max(8, (int(tile_rows) // 8) * 8)
        tb = min(tb, ((B + 7) // 8) * 8)

    num_tiles = pl.cdiv(B, tb)
    b_padded = num_tiles * tb

    if b_padded != B:
        pad = b_padded - B
        anchors = jnp.pad(anchors, ((0, pad), (0, 0)))
        positives = jnp.pad(positives, ((0, pad), (0, 0)))
        negatives = jnp.pad(negatives, ((0, pad), (0, 0)))

    needs_mask = (b_padded != B) and reduction in ("mean", "sum")

    kernel = functools.partial(
        _triplet_kernel, margin=margin, reduction=reduction,
        distance=distance, true_batch=B, tile_rows=tb, needs_mask=needs_mask)

    in_spec = pl.BlockSpec((tb, D), lambda i: (i, 0))

    if reduction == "none":
        out_shape = jax.ShapeDtypeStruct((b_padded, 1), jnp.float32)
        out_spec = pl.BlockSpec((tb, 1), lambda i: (i, 0))
        dim_sem = ("parallel",)          # independent tiles -> megacore OK
    else:
        out_shape = jax.ShapeDtypeStruct((1, 1), jnp.float32)
        out_spec = pl.BlockSpec((1, 1), lambda i: (0, 0))
        dim_sem = ("arbitrary",)         # resident accumulator across batch

    result = pl.pallas_call(
        kernel,
        out_shape=out_shape,
        grid=(num_tiles,),
        in_specs=[in_spec, in_spec, in_spec],
        out_specs=out_spec,
        compiler_params=pltpu.CompilerParams(
            dimension_semantics=dim_sem,
            vmem_limit_bytes=32 * 1024 * 1024),
    )(anchors, positives, negatives)

    if reduction == "none":
        return result[:B, 0]
    return result[0, 0]


def _reference(anchors, positives, negatives, margin=0.3, reduction="mean",
               distance="euclidean"):
    a = anchors.astype(jnp.float32)
    p = positives.astype(jnp.float32)
    n = negatives.astype(jnp.float32)
    if distance == "euclidean":
        pos = jnp.sqrt(jnp.sum((a - p + 1e-6) ** 2, axis=-1))
        neg = jnp.sqrt(jnp.sum((a - n + 1e-6) ** 2, axis=-1))
    else:
        def cos(x, y):
            num = jnp.sum(x * y, axis=-1)
            den = jnp.maximum(jnp.linalg.norm(x, axis=-1)
                              * jnp.linalg.norm(y, axis=-1), 1e-8)
            return num / den
        pos = 1.0 - cos(a, p)
        neg = 1.0 - cos(a, n)
    losses = jnp.maximum(pos - neg + margin, 0.0)
    if reduction == "mean":
        return losses.mean()
    if reduction == "sum":
        return losses.sum()
    return losses


if __name__ == "__main__":
    key = jax.random.PRNGKey(0)
    k1, k2, k3 = jax.random.split(key, 3)

    # small test shape consistent with the module: [batch_size, embedding_dim]
    B, D = 8, 32
    anchors = jax.random.normal(k1, (B, D), dtype=jnp.float32)
    positives = jax.random.normal(k2, (B, D), dtype=jnp.float32)
    negatives = jax.random.normal(k3, (B, D), dtype=jnp.float32)

    # 1) default: mean + euclidean (single tile)
    out = triplet_loss(anchors, positives, negatives,
                       margin=0.3, reduction="mean", distance="euclidean")
    jax.block_until_ready(out)
    ref = _reference(anchors, positives, negatives)
    assert jnp.allclose(out, ref, atol=1e-5, rtol=1e-5), (out, ref)

    # 2) 'none' + cosine (parallel per-tile output path)
    out_none = triplet_loss(anchors, positives, negatives,
                            reduction="none", distance="cosine")
    jax.block_until_ready(out_none)
    ref_none = _reference(anchors, positives, negatives,
                          reduction="none", distance="cosine")
    assert jnp.allclose(out_none, ref_none, atol=1e-4, rtol=1e-4)

    # 3) multi-tile accumulator path (force 3 grid steps): sum + euclidean
    B2 = 24
    a2 = jax.random.normal(k1, (B2, D), dtype=jnp.float32)
    p2 = jax.random.normal(k2, (B2, D), dtype=jnp.float32)
    n2 = jax.random.normal(k3, (B2, D), dtype=jnp.float32)
    out_sum = triplet_loss(a2, p2, n2, reduction="sum",
                           distance="euclidean", tile_rows=8)
    jax.block_until_ready(out_sum)
    ref_sum = _reference(a2, p2, n2, reduction="sum", distance="euclidean")
    assert jnp.allclose(out_sum, ref_sum, atol=1e-4, rtol=1e-5), (out_sum, ref_sum)

    # 4) ragged batch (padding + in-kernel mask): mean + cosine
    B3 = 13
    a3 = jax.random.normal(k2, (B3, D), dtype=jnp.float32)
    p3 = jax.random.normal(k3, (B3, D), dtype=jnp.float32)
    n3 = jax.random.normal(k1, (B3, D), dtype=jnp.float32)
    out_rag = triplet_loss(a3, p3, n3, reduction="mean",
                           distance="cosine", tile_rows=8)
    jax.block_until_ready(out_rag)
    ref_rag = _reference(a3, p3, n3, reduction="mean", distance="cosine")
    assert jnp.allclose(out_rag, ref_rag, atol=1e-4, rtol=1e-4), (out_rag, ref_rag)

    print("KERNEL_OK")
</pallas_src>

<mosaic_0001>
module attributes {stable_mosaic.version = 11 : i64} {
  func.func @_triplet_kernel(%arg0: i32, %arg1: memref<8x32xf32, #tpu.memory_space<vmem>>, %arg2: memref<8x32xf32, #tpu.memory_space<vmem>>, %arg3: memref<8x32xf32, #tpu.memory_space<vmem>>, %arg4: memref<1x1xf32, #tpu.memory_space<vmem>>) attributes {dimension_semantics = [#tpu.dimension_semantics<arbitrary>], iteration_bounds = array<i64: 1>, scalar_prefetch = 0 : i64, scratch_operands = 0 : i64, tpu.core_type = #tpu.core_type<tc>, window_params = [{transform_indices = @transform_0, window_bounds = array<i64: 8, 32>}, {transform_indices = @transform_1, window_bounds = array<i64: 8, 32>}, {transform_indices = @transform_2, window_bounds = array<i64: 8, 32>}, {pipeline_mode = #tpu.pipeline_mode<synchronous>, transform_indices = @transform_3, window_bounds = array<i64: 1, 1>}]} {
    %c0 = arith.constant 0 : index
    %c0_0 = arith.constant 0 : index
    %0 = vector.load %arg1[%c0, %c0_0] : memref<8x32xf32, #tpu.memory_space<vmem>>, vector<8x32xf32>
    %c0_1 = arith.constant 0 : index
    %c0_2 = arith.constant 0 : index
    %1 = vector.load %arg2[%c0_1, %c0_2] : memref<8x32xf32, #tpu.memory_space<vmem>>, vector<8x32xf32>
    %c0_3 = arith.constant 0 : index
    %c0_4 = arith.constant 0 : index
    %2 = vector.load %arg3[%c0_3, %c0_4] : memref<8x32xf32, #tpu.memory_space<vmem>>, vector<8x32xf32>
    %3 = arith.subf %0, %1 : vector<8x32xf32>
    %cst = arith.constant 9.99999997E-7 : f32
    %4 = vector.broadcast %cst : f32 to vector<8x32xf32>
    %5 = arith.addf %3, %4 : vector<8x32xf32>
    %6 = arith.subf %0, %2 : vector<8x32xf32>
    %cst_5 = arith.constant 9.99999997E-7 : f32
    %7 = vector.broadcast %cst_5 : f32 to vector<8x32xf32>
    %8 = arith.addf %6, %7 : vector<8x32xf32>
    %9 = arith.mulf %5, %5 : vector<8x32xf32>
    %cst_6 = arith.constant dense<0.000000e+00> : vector<8xf32>
    %10 = vector.multi_reduction <add>, %9, %cst_6 [1] : vector<8x32xf32> to vector<8xf32>
    %11 = vector.shape_cast %10 : vector<8xf32> to vector<8x1xf32>
    %12 = math.sqrt %11 : vector<8x1xf32>
    %13 = arith.mulf %8, %8 : vector<8x32xf32>
    %cst_7 = arith.constant dense<0.000000e+00> : vector<8xf32>
    %14 = vector.multi_reduction <add>, %13, %cst_7 [1] : vector<8x32xf32> to vector<8xf32>
    %15 = vector.shape_cast %14 : vector<8xf32> to vector<8x1xf32>
    %16 = math.sqrt %15 : vector<8x1xf32>
    %17 = arith.subf %12, %16 : vector<8x1xf32>
    %cst_8 = arith.constant 3.000000e-01 : f32
    %18 = vector.broadcast %cst_8 : f32 to vector<8x1xf32>
    %19 = arith.addf %17, %18 : vector<8x1xf32>
    %cst_9 = arith.constant 0.000000e+00 : f32
    %20 = vector.broadcast %cst_9 : f32 to vector<8x1xf32>
    %21 = arith.maximumf %19, %20 : vector<8x1xf32>
    %22 = vector.shape_cast %21 : vector<8x1xf32> to vector<1x8x1xf32>
    %cst_10 = arith.constant dense<0.000000e+00> : vector<1xf32>
    %23 = vector.multi_reduction <add>, %22, %cst_10 [1, 2] : vector<1x8x1xf32> to vector<1xf32>
    %24 = vector.shape_cast %23 : vector<1xf32> to vector<1x1x1xf32>
    %25 = vector.extract %24[0, 0, 0] : f32 from vector<1x1x1xf32>
    %c0_i32 = arith.constant 0 : i32
    %26 = arith.cmpi eq, %arg0, %c0_i32 : i32
    %27 = arith.extui %26 : i1 to i32
    %c0_i32_11 = arith.constant 0 : i32
    %28 = arith.cmpi ne, %27, %c0_i32_11 : i32
    scf.if %28 {
      %cst_18 = arith.constant 0.000000e+00 : f32
      %36 = vector.broadcast %cst_18 : f32 to vector<1x1xf32>
      %c0_19 = arith.constant 0 : index
      %c0_20 = arith.constant 0 : index
      %37 = vector.load %arg4[%c0_19, %c0_20] : memref<1x1xf32, #tpu.memory_space<vmem>>, vector<1x1xf32>
      tpu.vector_store %arg4[%c0_19, %c0_20], %36 {strides = array<i32>} : memref<1x1xf32, #tpu.memory_space<vmem>>, vector<1x1xf32>,
    } else {
    }
    %c0_12 = arith.constant 0 : index
    %c0_13 = arith.constant 0 : index
    %29 = vector.load %arg4[%c0_12, %c0_13] : memref<1x1xf32, #tpu.memory_space<vmem>>, vector<1x1xf32>
    %30 = vector.broadcast %25 : f32 to vector<1x1xf32>
    %31 = arith.addf %29, %30 : vector<1x1xf32>
    %c0_14 = arith.constant 0 : index
    %c0_15 = arith.constant 0 : index
    %32 = vector.load %arg4[%c0_14, %c0_15] : memref<1x1xf32, #tpu.memory_space<vmem>>, vector<1x1xf32>
    tpu.vector_store %arg4[%c0_14, %c0_15], %31 {strides = array<i32>} : memref<1x1xf32, #tpu.memory_space<vmem>>, vector<1x1xf32>,
    %c0_i32_16 = arith.constant 0 : i32
    %33 = arith.cmpi eq, %arg0, %c0_i32_16 : i32
    %34 = arith.extui %33 : i1 to i32
    %c0_i32_17 = arith.constant 0 : i32
    %35 = arith.cmpi ne, %34, %c0_i32_17 : i32
    scf.if %35 {
      %c0_18 = arith.constant 0 : index
      %c0_19 = arith.constant 0 : index
      %36 = vector.load %arg4[%c0_18, %c0_19] : memref<1x1xf32, #tpu.memory_space<vmem>>, vector<1x1xf32>
      %cst_20 = arith.constant 8.000000e+00 : f32
      %37 = vector.broadcast %cst_20 : f32 to vector<1x1xf32>
      %38 = arith.divf %36, %37 : vector<1x1xf32>
      %c0_21 = arith.constant 0 : index
      %c0_22 = arith.constant 0 : index
      %39 = vector.load %arg4[%c0_21, %c0_22] : memref<1x1xf32, #tpu.memory_space<vmem>>, vector<1x1xf32>
      tpu.vector_store %arg4[%c0_21, %c0_22], %38 {strides = array<i32>} : memref<1x1xf32, #tpu.memory_space<vmem>>, vector<1x1xf32>,
    } else {
    }
    return
  }
  func.func @transform_0(%arg0: i32) -> (i32, i32) {
    %c0_i32 = arith.constant 0 : i32
    %c0_i32_0 = arith.constant 0 : i32
    return %arg0, %c0_i32 : i32, i32
  }
  func.func @transform_1(%arg0: i32) -> (i32, i32) {
    %c0_i32 = arith.constant 0 : i32
    %c0_i32_0 = arith.constant 0 : i32
    return %arg0, %c0_i32 : i32, i32
  }
  func.func @transform_2(%arg0: i32) -> (i32, i32) {
    %c0_i32 = arith.constant 0 : i32
    %c0_i32_0 = arith.constant 0 : i32
    return %arg0, %c0_i32 : i32, i32
  }
  func.func @transform_3(%arg0: i32) -> (i32, i32) {
    %c0_i32 = arith.constant 0 : i32
    %c0_i32_0 = arith.constant 0 : i32
    %c0_i32_1 = arith.constant 0 : i32
    return %c0_i32, %c0_i32_0 : i32, i32
  }
}

</mosaic_0001>

<llo_original>
// kernel: tpu_custom_call.1
$region0: #{tpu_custom_call.1}
  #allocation0 [shape = 'u32[]', space=smem, size = 0x4, offset = 0x4, fixed_abs, tag = 'smem constant byte address 0x4 - core index']
  #allocation1 [shape = 'u32[144,128]{1,0:T(1,128)}', space=vmem, size = 0x12000, scoped, tag = 'internal scratch']
  %s0 = inlined_call_operand.hbm [shape: f32[8,32], index: 0, kind: input, shape index: {}]
  %s1 = inlined_call_operand.hbm [shape: f32[8,32], index: 1, kind: input, shape index: {}]
  %s2 = inlined_call_operand.hbm [shape: f32[8,32], index: 2, kind: input, shape index: {}]
  %s3 = inlined_call_operand.hbm [shape: f32[1,1], index: 3, kind: output, shape index: {}]
  %s4 = sld [smem:[#allocation0]]
  $region42: #{tpu_custom_call.1} parent=0
    _
  %s6 = ssub.s32 1, %s4
  %s7 = scalar_select 0, %s6, %s4
  $region1: #{tpu_custom_call.1} parent=0
    #allocation2 [shape = 'u8[4096]{0}', space=vmem, size = 0x1000, scoped, tag = 'input window, operand 0, single buffered']
    #allocation3 [shape = 's32[1]{0}', space=sflag, size = 0x4, scoped, tag = 'scoped memory for tpu_custom_call.1']
    #allocation4 [shape = 's32[1]{0}', space=sflag, size = 0x4, scoped, tag = 'scoped memory for tpu_custom_call.1']
    #allocation5 [shape = 'u8[4096]{0}', space=vmem, size = 0x1000, scoped, tag = 'input window, operand 1, single buffered']
    #allocation6 [shape = 's32[1]{0}', space=sflag, size = 0x4, scoped, tag = 'scoped memory for tpu_custom_call.1']
    #allocation7 [shape = 'u8[4096]{0}', space=vmem, size = 0x1000, scoped, tag = 'input window, operand 2, single buffered']
    #allocation8 [shape = 'u8[512]{0}', space=vmem, size = 0x400, scoped, tag = 'output window, operand 0, single buffered']
    %8 = vsyncpa [#allocation3], 0
    %9 = vsyncpa [#allocation6], 0
    %10 = vsyncpa [#allocation4], 0
    // Predicated region
    $region2: #{tpu_custom_call.1} parent=1 // pred_check
      _
    $region3: #{tpu_custom_call.1} parent=1 // pred_check_branch
      %12 = sbr.rel (0) target = $region5
    $region4: #{tpu_custom_call.1} parent=1 // pred_region
      %s14 = ssub.s32 128, 128
      %15 = vsyncadd [#allocation3], %s14
      %s17 = sshll.u32 [#allocation2], 4
      %s18 = int_to_ptr.vmem [resolvable:$true] %s17
      %20 = dma.hbm_to_vmem [thread:$0]  %s0, 128, %s18, [#allocation3]
    $region5: #{tpu_custom_call.1} parent=1 // pred_fallthru
      _
    // Predicated region
    $region6: #{tpu_custom_call.1} parent=1 // pred_check
      _
    $region7: #{tpu_custom_call.1} parent=1 // pred_check_branch
      %22 = sbr.rel (0) target = $region9
    $region8: #{tpu_custom_call.1} parent=1 // pred_region
      %s24 = ssub.s32 128, 128
      %25 = vsyncadd [#allocation6], %s24
      %s27 = sshll.u32 [#allocation5], 4
      %s28 = int_to_ptr.vmem [resolvable:$true] %s27
      %30 = dma.hbm_to_vmem [thread:$0]  %s1, 128, %s28, [#allocation6]
    $region9: #{tpu_custom_call.1} parent=1 // pred_fallthru
      _
    // Predicated region
    $region10: #{tpu_custom_call.1} parent=1 // pred_check
      _
    $region11: #{tpu_custom_call.1} parent=1 // pred_check_branch
      %32 = sbr.rel (0) target = $region13
    $region12: #{tpu_custom_call.1} parent=1 // pred_region
      %s34 = ssub.s32 128, 128
      %35 = vsyncadd [#allocation6], %s34
      %s37 = sshll.u32 [#allocation7], 4
      %s38 = int_to_ptr.vmem [resolvable:$true] %s37
      %40 = dma.hbm_to_vmem [thread:$0]  %s2, 128, %s38, [#allocation6]
    $region13: #{tpu_custom_call.1} parent=1 // pred_fallthru
      _
    // Predicated region
    $region14: #{tpu_custom_call.1} parent=1 // pred_check
      _
    $region15: #{tpu_custom_call.1} parent=1 // pred_check_branch
      %42 = sbr.rel (0) target = $region17
    $region16: #{tpu_custom_call.1} parent=1 // pred_region
      %43 = dma.done [#allocation3], 128
    $region17: #{tpu_custom_call.1} parent=1 // pred_fallthru
      _
    // Predicated region
    $region18: #{tpu_custom_call.1} parent=1 // pred_check
      _
    $region19: #{tpu_custom_call.1} parent=1 // pred_check_branch
      %45 = sbr.rel (0) target = $region21
    $region20: #{tpu_custom_call.1} parent=1 // pred_region
      %46 = dma.done [#allocation6], 128
    $region21: #{tpu_custom_call.1} parent=1 // pred_fallthru
      _
    // Predicated region
    $region22: #{tpu_custom_call.1} parent=1 // pred_check
      _
    $region23: #{tpu_custom_call.1} parent=1 // pred_check_branch
      %48 = sbr.rel (0) target = $region25
    $region24: #{tpu_custom_call.1} parent=1 // pred_region
      %49 = dma.done [#allocation6], 128
    $region25: #{tpu_custom_call.1} parent=1 // pred_fallthru
      _
    %v50 = vld [vmem:[#allocation2] sm:$0xff]
    %v51 = vld [vmem:[#allocation5] sm:$0xff]
    %v52 = vld [vmem:[#allocation7] sm:$0xff]
    %v53 = vsub.f32 %v50, %v51
    %v54 = vadd.f32 %v53, 1e-06
    %v55 = vsub.f32 %v50, %v52
    %v56 = vadd.f32 %v55, 1e-06
    %v57 = vmul.f32 %v54, %v54
    %vm58 = vcmask 261120
    %v59 = vsel %vm58, %v57, 0.0
    %60 = vadd.xlane.f32.xlu0 %v59
    %v61 = vpop.xlane.xlu0 %60
    %v62 = vrsqrt.pop %v61
    %v63 = vmul.f32 %v61, %v62
    %vm64 = vcmp.eq.f32.partialorder %v61, inf
    %v65 = vsel %vm64, %v61, %v63
    %vm66 = vcmp.eq.f32.partialorder %v61, 0.0
    %v67 = vand.u32 %v61, 2147483648
    %v68 = vsel %vm66, %v67, %v65
    %v69 = vmul.f32 %v56, %v56
    %v70 = vsel %vm58, %v69, 0.0
    %71 = vadd.xlane.f32.xlu0 %v70
    %v72 = vpop.xlane.xlu0 %71
    %v73 = vrsqrt.pop %v72
    %v74 = vmul.f32 %v72, %v73
    %vm75 = vcmp.eq.f32.partialorder %v72, inf
    %v76 = vsel %vm75, %v72, %v74
    %vm77 = vcmp.eq.f32.partialorder %v72, 0.0
    %v78 = vand.u32 %v72, 2147483648
    %v79 = vsel %vm77, %v78, %v76
    %v80 = vsub.f32 %v68, %v79
    %v81 = vadd.f32 %v80, 0.3
    %v82 = vmax.f32 %v81, 0.0
    %vm83 = vcmask 7168
    %v84 = vsel %vm83, %v82, 0.0
    %85 = vadd.xlane.f32.xlu0 %v84
    %v86 = vpop.xlane.xlu0 %85
    %v87 = vrot.slane %v86, 4
    %v88 = vadd.f32 %v86, %v87
    %v89 = vrot.slane %v88, 2
    %v90 = vadd.f32 %v88, %v89
    %v91 = vrot.slane %v90, 1
    %v92 = vadd.f32 %v90, %v91
    %s93 = vtos %v92
    %p94 = scmp.eq.s32.totalorder 0, 0
    // Predicated region
    $region26: #{tpu_custom_call.1} parent=1 // pred_check
      %p95 = pneg %p94
    $region27: #{tpu_custom_call.1} parent=1 // pred_check_branch
      %97 = sbr.rel (%p95) target = $region29
    $region28: #{tpu_custom_call.1} parent=1 // pred_region
      %vm98 = vcmask 0
      %99 = vst.msk [vmem:[#allocation8] sm:$0x1] %vm98, 0.0
    $region29: #{tpu_custom_call.1} parent=1 // pred_fallthru
      _
    %v100 = vld [vmem:[#allocation8] sm:$0x1]
    %v101 = vstv %s93
    %v102 = vadd.f32 %v100, %v101
    %vm103 = vcmask 0
    %104 = vst.msk [vmem:[#allocation8] sm:$0x1] %vm103, %v102
    // Predicated region
    $region30: #{tpu_custom_call.1} parent=1 // pred_check
      %p105 = pneg %p94
    $region31: #{tpu_custom_call.1} parent=1 // pred_check_branch
      %107 = sbr.rel (%p105) target = $region33
    $region32: #{tpu_custom_call.1} parent=1 // pred_region
      %v108 = vld [vmem:[#allocation8] sm:$0x1]
      %v109 = vrcp.pop 8.0
      %v110 = vmul.f32 %v108, %v109
      %111 = vst.msk [vmem:[#allocation8] sm:$0x1] %vm103, %v110
    $region33: #{tpu_custom_call.1} parent=1 // pred_fallthru
      _
    // Predicated region
    $region34: #{tpu_custom_call.1} parent=1 // pred_check
      _
    $region35: #{tpu_custom_call.1} parent=1 // pred_check_branch
      %113 = sbr.rel (0) target = $region37
    $region36: #{tpu_custom_call.1} parent=1 // pred_region
      %s115 = ssub.s32 16, 16
      %116 = vsyncadd [#allocation4], %s115
      %s118 = sshll.u32 [#allocation8], 4
      %s119 = int_to_ptr.vmem [resolvable:$true] %s118
      %121 = dma.vmem_to_hbm [thread:$0]  %s119, 16, %s3, [#allocation4]
    $region37: #{tpu_custom_call.1} parent=1 // pred_fallthru
      _
    // Predicated region
    $region38: #{tpu_custom_call.1} parent=1 // pred_check
      _
    $region39: #{tpu_custom_call.1} parent=1 // pred_check_branch
      %123 = sbr.rel (0) target = $region41
    $region40: #{tpu_custom_call.1} parent=1 // pred_region
      %124 = dma.done [#allocation4], 16
    $region41: #{tpu_custom_call.1} parent=1 // pred_fallthru
      _
    %125 = vsyncpa [#allocation3], 1
    %126 = vsyncpa [#allocation6], 1
    %127 = vsyncpa [#allocation4], 1

</llo_original>
